<compile_context>
chip_gen: v5e
topology: v5e:2x2
jax: 0.10.0
libtpu: 0.0.40
codegen_flags: <defaults>
</compile_context>

<pallas_src>
import functools

import jax
import jax.numpy as jnp
from jax import lax
from jax.experimental import pallas as pl
from jax.experimental.pallas import tpu as pltpu


def _round_up(x, m):
    return ((x + m - 1) // m) * m


def _pick_block(n_paths, qp, budget_bytes=2 << 20):
    """Square path-block size B (B divides N; B % 8 == 0 or B == N) such that
    the resident PDE carry (B*B, Qp) f32 stays near `budget_bytes`."""
    max_rows = max(64, budget_bytes // (qp * 4))
    if n_paths * n_paths <= max_rows:
        return n_paths
    best = 0
    b = 8
    while b < n_paths:
        if n_paths % b == 0 and b * b <= max_rows:
            best = b
        b += 8
    # TODO(synk): ragged / padded tiles for N with no suitable divisor.
    return best if best > 0 else n_paths


def _vmem_limit_bytes(block, qp, d, pc):
    """Size the scoped-VMEM limit from actual buffers, capped per generation."""
    f32, bf16 = 4, 2
    carry = block * block * qp * f32                       # PDE row carry
    tri = qp * qp * f32                                    # cumsum matrix
    dzq = 2 * _round_up(max(d, 8), 16) * block * qp * bf16  # rhs block (2 bufs)
    dzt = 2 * pc * _round_up(block, 8) * 128 * bf16        # lhs slab (2 bufs)
    out = 2 * block * block * 128 * f32                    # lane-padded output
    temps = 6 * carry                                      # per-step temporaries
    want = carry + tri + dzq + dzt + out + temps + (4 << 20)
    try:
        cap = int(pltpu.get_tpu_info().vmem_capacity_bytes)  # 64 MiB on v7x, 128 MiB v5e/v6e
    except Exception:  # pragma: no cover - conservative fallback
        cap = 128 << 20
    return int(min(max(want, 32 << 20), (cap * 4) // 5))


def _sig_pde_kernel(ti_ref, tj_ref, dzt_ref, dzq_ref, out_ref,
                    prev_ref, tri_ref, *, q_last):
    """Pc fused Goursat-PDE p-steps for one (i_block, j_block) path-pair tile.

    ti_ref/tj_ref: (n_tiles,) SMEM  tile -> (i_block, j_block)   (index_maps only)
    dzt_ref : (Pc, B, D)  bf16  lhs increments for this p-chunk / i-block
    dzq_ref : (D, B*Qp)   bf16  all rhs increments of the j-block (q zero-padded)
    out_ref : (1, B*B, 1) f32   K[i, j] corner values (written on the last chunk)
    prev_ref: (B*B, Qp)   f32   PDE row carry: prev[r, q] = K_r[p, q+1]
    tri_ref : (Qp, Qp)    f32   upper-triangular ones (cumsum-as-matmul)
    """
    del ti_ref, tj_ref  # consumed by the BlockSpec index_maps only
    pc = pl.program_id(1)
    rows, qp = prev_ref.shape
    p_steps = dzt_ref.shape[0]

    # Per-tile init: PDE boundary row K[0, :] = 1 and in-kernel generation of
    # the triangular cumsum matrix (no HBM input, no double buffering).
    @pl.when(pc == 0)
    def _init():
        prev_ref[...] = jnp.ones_like(prev_ref)
        r = lax.broadcasted_iota(jnp.int32, (qp, qp), 0)
        c = lax.broadcasted_iota(jnp.int32, (qp, qp), 1)
        tri_ref[...] = (r <= c).astype(jnp.float32)

    # Hoisted loop invariants.
    dzq = dzq_ref[...]                                        # (D, B*Qp) bf16
    tri = tri_ref[...]                                        # (Qp, Qp)  f32
    q_is_0 = lax.broadcasted_iota(jnp.int32, (1, qp), 1) == 0  # cheap (1, Qp) mask

    def step(s, prev):
        # Fused increment-Gram slice for PDE step p:
        #   inc[i*B + j, q] = <dz_i[p, :], dz_j[q, :]>   (bf16 x bf16 -> f32)
        dz_p = dzt_ref[s]                                     # (B, D) bf16
        inc = lax.dot_general(dz_p, dzq, (((1,), (0,)), ((), ())),
                              preferred_element_type=jnp.float32)  # (B, B*Qp)
        # TODO(synk): check on v5e whether this lane->sublane reshape relayouts.
        inc = inc.reshape(rows, qp)

        # Row recursion: K[p+1, q+1] = K[p+1, q] + K[p, q+1] + K[p, q]*(inc - 1)
        # with prev[q] = K[p, q+1]; K[p, q] is prev shifted right one lane with
        # the boundary value 1 injected at q == 0 (wrap lanes are masked).
        shifted = pltpu.roll(prev, 1, axis=1)
        k_pq = jnp.where(q_is_0, 1.0, shifted)                # K[p, q]
        c_row = prev + k_pq * (inc - 1.0)
        # K[p+1, q+1] = 1 + cumsum_q(c_row): lane-aligned triangular MXU matmul.
        return 1.0 + jnp.dot(c_row, tri, preferred_element_type=jnp.float32)

    new_row = lax.fori_loop(0, p_steps, step, prev_ref[...], unroll=True)
    prev_ref[...] = new_row

    # Final PDE corner K[P, Q] = prev[Q-1] for every pair in this tile.
    # Padded q lanes (q >= Q) evolve with garbage but are never read here; zero
    # padded p steps are exact identities of the recursion.
    @pl.when(pc == pl.num_programs(1) - 1)
    def _finalize():
        out_ref[0, :, :] = new_row[:, q_last:q_last + 1]


def sig_mmd(X, Y, n=0, solver=0, rbf=False, sigma=1.0):
    """JAX/Pallas equivalent of SigMMD(n, solver, rbf, sigma).forward(X, Y)."""
    # TODO(synk): only the explicit order-0 PDE scheme (solver=0) is implemented.
    assert solver == 0, "only solver=0 implemented"
    # TODO(synk): only the linear static kernel is implemented (rbf=False).
    assert not rbf, "only rbf=False implemented"
    del sigma  # unused for the linear static kernel

    X = jnp.asarray(X, jnp.float32)
    Y = jnp.asarray(Y, jnp.float32)
    A = X.shape[0]

    dX = X[:, 1:, :] - X[:, :-1, :]
    dY = Y[:, 1:, :] - Y[:, :-1, :]
    if n > 0:  # dyadic refinement: each increment split into 2**n equal pieces
        # TODO(synk): exploit the repeat structure inside the kernel instead.
        f = 2 ** n
        dX = jnp.repeat(dX, f, axis=1) / f
        dY = jnp.repeat(dY, f, axis=1) / f

    dZ = jnp.concatenate([dX, dY], axis=0)                     # (N, Q, D) f32
    N, Q, D = dZ.shape

    # bf16 operands for the increment-Gram matmul (f32 accumulate). The
    # contraction length is only D, so this is accuracy-benign and ~2x faster
    # on v6e/v7x MXUs; it also halves the rhs HBM/VMEM footprint.
    dZ16 = dZ.astype(jnp.bfloat16)

    # Lane-aligned q width (Qp >= Q); padded increments are zero and, by
    # causality of the q-recursion, never reach the real [.., Q-1] corner.
    Qp = pl.cdiv(Q, 128) * 128

    # p-chunking: ~8 fused PDE steps per grid step; zero-padded steps are
    # exact identities of the recursion, so padding P up is safe.
    n_pc = pl.cdiv(Q, 8)
    Pc = pl.cdiv(Q, n_pc)
    P_pad = n_pc * Pc

    # rhs operand transposed to (D, N*Qp): D on sublanes, paths*q on lanes.
    dZq = jnp.pad(dZ16, ((0, 0), (0, Qp - Q), (0, 0)))         # (N, Qp, D)
    dZqT = jnp.transpose(dZq, (2, 0, 1)).reshape(D, N * Qp)    # (D, N*Qp)

    # lhs operand: per-p slices, pipelined along the chunked p axis.
    dZt = jnp.transpose(dZ16, (1, 0, 2))                       # (Q, N, D)
    dZt = jnp.pad(dZt, ((0, P_pad - Q), (0, 0), (0, 0)))       # (P_pad, N, D)

    # Square path-block tiling of the symmetric pair grid; only the upper
    # triangle of (i_block, j_block) tiles is solved.
    B = _pick_block(N, Qp)
    n_b = N // B
    tiles = [(i, j) for i in range(n_b) for j in range(i, n_b)]
    n_tiles = len(tiles)
    ti = jnp.asarray([t[0] for t in tiles], dtype=jnp.int32)
    tj = jnp.asarray([t[1] for t in tiles], dtype=jnp.int32)

    kernel = functools.partial(_sig_pde_kernel, q_last=Q - 1)

    k_tiles = pl.pallas_call(
        kernel,
        out_shape=jax.ShapeDtypeStruct((n_tiles, B * B, 1), jnp.float32),
        grid_spec=pltpu.PrefetchScalarGridSpec(
            num_scalar_prefetch=2,               # tile -> (i_block, j_block)
            grid=(n_tiles, n_pc),
            in_specs=[
                # (Pc, B, D) lhs slab for this p-chunk / i-block: pipelined.
                pl.BlockSpec((Pc, B, D),
                             lambda t, pc, ti_r, tj_r: (pc, ti_r[t], 0)),
                # (D, B*Qp) rhs increments for the j-block: resident over p.
                pl.BlockSpec((D, B * Qp),
                             lambda t, pc, ti_r, tj_r: (0, tj_r[t])),
            ],
            out_specs=pl.BlockSpec((1, B * B, 1),
                                   lambda t, pc, ti_r, tj_r: (t, 0, 0)),
            scratch_shapes=[
                pltpu.VMEM((B * B, Qp), jnp.float32),   # PDE row carry
                pltpu.VMEM((Qp, Qp), jnp.float32),      # triangular cumsum mat
            ],
        ),
        compiler_params=pltpu.CompilerParams(
            # Tile axis is genuinely independent: shards across TensorCores on
            # multi-TC chips (v7x/v5p); costs nothing on 1-TC v5e/v6e.
            dimension_semantics=("parallel", "arbitrary"),
            vmem_limit_bytes=_vmem_limit_bytes(B, Qp, D, Pc),
        ),
    )(ti, tj, dZt, dZqT)

    # Host glue: scatter the upper-triangular tiles (and their symmetric
    # mirrors, K(z_i, z_j) = K(z_j, z_i)) into the full N x N Gram matrix,
    # then take the tiny means (biased MMD estimator, diagonal included).
    K = jnp.zeros((N, N), jnp.float32)
    for t, (ib, jb) in enumerate(tiles):
        blk = k_tiles[t, :, 0].reshape(B, B)
        K = K.at[ib * B:(ib + 1) * B, jb * B:(jb + 1) * B].set(blk)
        if ib != jb:
            K = K.at[jb * B:(jb + 1) * B, ib * B:(ib + 1) * B].set(blk.T)

    k_xx = K[:A, :A]
    k_yy = K[A:, A:]
    k_xy = K[:A, A:]
    dist = jnp.mean(k_xx) + jnp.mean(k_yy) - 2.0 * jnp.mean(k_xy)
    mse0 = jnp.mean((X[:, 0, :] - Y[:, 0, :]) ** 2)
    return mse0 + dist


if __name__ == "__main__":
    key = jax.random.PRNGKey(0)
    kx, ky = jax.random.split(key)
    A, M, D = 2, 8, 4  # batch=2, seq_len=8, channels=4
    X = 0.1 * jax.random.normal(kx, (A, M, D), dtype=jnp.float32)
    Y = 0.1 * jax.random.normal(ky, (A, M, D), dtype=jnp.float32)

    result = jax.jit(sig_mmd)(X, Y)
    jax.block_until_ready(result)
    print("KERNEL_OK")
</pallas_src>

<mosaic_0001>
module attributes {stable_mosaic.version = 11 : i64} {
  func.func @_sig_pde_kernel(%arg0: i32, %arg1: i32, %arg2: memref<1xi32, #tpu.memory_space<smem>>, %arg3: memref<1xi32, #tpu.memory_space<smem>>, %arg4: memref<7x4x4xbf16, #tpu.memory_space<vmem>>, %arg5: memref<4x512xbf16, #tpu.memory_space<vmem>>, %arg6: memref<1x16x1xf32, #tpu.memory_space<vmem>>, %arg7: memref<16x128xf32, #tpu.memory_space<vmem>>, %arg8: memref<128x128xf32, #tpu.memory_space<vmem>>) attributes {dimension_semantics = [#tpu.dimension_semantics<parallel>, #tpu.dimension_semantics<arbitrary>], iteration_bounds = array<i64: 1, 1>, scalar_prefetch = 2 : i64, scratch_operands = 2 : i64, tpu.core_type = #tpu.core_type<tc>, window_params = [{transform_indices = @transform_0, window_bounds = array<i64: 7, 4, 4>}, {transform_indices = @transform_1, window_bounds = array<i64: 4, 512>}, {transform_indices = @transform_2, window_bounds = array<i64: 1, 16, 1>}]} {
    %c0_i32 = arith.constant 0 : i32
    %0 = arith.cmpi eq, %arg1, %c0_i32 : i32
    %1 = arith.extui %0 : i1 to i32
    %c0_i32_0 = arith.constant 0 : i32
    %2 = arith.cmpi ne, %1, %c0_i32_0 : i32
    scf.if %2 {
      %cst_67 = arith.constant 1.000000e+00 : f32
      %132 = vector.broadcast %cst_67 : f32 to vector<16x128xf32>
      %c0_68 = arith.constant 0 : index
      %c0_69 = arith.constant 0 : index
      %133 = vector.load %arg7[%c0_68, %c0_69] : memref<16x128xf32, #tpu.memory_space<vmem>>, vector<16x128xf32>
      tpu.vector_store %arg7[%c0_68, %c0_69], %132 {strides = array<i32>} : memref<16x128xf32, #tpu.memory_space<vmem>>, vector<16x128xf32>,
      %134 = tpu.iota {dimensions = array<i32: 0>} : vector<128x128xi32>
      %135 = tpu.iota {dimensions = array<i32: 1>} : vector<128x128xi32>
      %136 = arith.cmpi sle, %134, %135 : vector<128x128xi32>
      %137 = arith.extui %136 : vector<128x128xi1> to vector<128x128xi32>
      %138 = arith.sitofp %137 : vector<128x128xi32> to vector<128x128xf32>
      %c0_70 = arith.constant 0 : index
      %c0_71 = arith.constant 0 : index
      %139 = vector.load %arg8[%c0_70, %c0_71] : memref<128x128xf32, #tpu.memory_space<vmem>>, vector<128x128xf32>
      tpu.vector_store %arg8[%c0_70, %c0_71], %138 {strides = array<i32>} : memref<128x128xf32, #tpu.memory_space<vmem>>, vector<128x128xf32>,
    } else {
    }
    %c0 = arith.constant 0 : index
    %c0_1 = arith.constant 0 : index
    %3 = vector.load %arg5[%c0, %c0_1] : memref<4x512xbf16, #tpu.memory_space<vmem>>, vector<4x512xbf16>
    %c0_2 = arith.constant 0 : index
    %c0_3 = arith.constant 0 : index
    %4 = vector.load %arg8[%c0_2, %c0_3] : memref<128x128xf32, #tpu.memory_space<vmem>>, vector<128x128xf32>
    %5 = tpu.iota {dimensions = array<i32: 1>} : vector<1x128xi32>
    %c0_i32_4 = arith.constant 0 : i32
    %6 = vector.broadcast %c0_i32_4 : i32 to vector<1x128xi32>
    %7 = arith.cmpi eq, %5, %6 : vector<1x128xi32>
    %c0_5 = arith.constant 0 : index
    %c0_6 = arith.constant 0 : index
    %8 = vector.load %arg7[%c0_5, %c0_6] : memref<16x128xf32, #tpu.memory_space<vmem>>, vector<16x128xf32>
    %c0_i32_7 = arith.constant 0 : i32
    %9 = arith.index_cast %c0_i32_7 : i32 to index
    %c0_8 = arith.constant 0 : index
    %c0_9 = arith.constant 0 : index
    %10 = vector.load %arg4[%9, %c0_8, %c0_9] : memref<7x4x4xbf16, #tpu.memory_space<vmem>>, vector<1x4x4xbf16>
    %11 = vector.shape_cast %10 : vector<1x4x4xbf16> to vector<4x4xbf16>
    %cst = arith.constant dense<0.000000e+00> : vector<4x512xf32>
    %12 = tpu.matmul %11, %3, %cst {dimension_numbers = #tpu.dot_dimension_numbers<[1], [0], [0], [1], [0, 0, 1, 1], [], []>} : vector<4x4xbf16>, vector<4x512xbf16>, vector<4x512xf32> -> vector<4x512xf32>
    %13 = vector.shape_cast %12 : vector<4x512xf32> to vector<16x128xf32>
    %c1_i32 = arith.constant 1 : i32
    %14 = tpu.dynamic_rotate %8 by %c1_i32 dim 1 : vector<16x128xf32>, i32 -> vector<16x128xf32>
    %cst_10 = arith.constant 1.000000e+00 : f32
    %15 = vector.shape_cast %7 : vector<1x128xi1> to vector<1x128xi1>
    %16 = vector.broadcast %15 : vector<1x128xi1> to vector<16x128xi1>
    %17 = vector.broadcast %cst_10 : f32 to vector<16x128xf32>
    %18 = arith.select %16, %17, %14 : vector<16x128xi1>, vector<16x128xf32>
    %cst_11 = arith.constant 1.000000e+00 : f32
    %19 = vector.broadcast %cst_11 : f32 to vector<16x128xf32>
    %20 = arith.subf %13, %19 : vector<16x128xf32>
    %21 = arith.mulf %18, %20 : vector<16x128xf32>
    %22 = arith.addf %8, %21 : vector<16x128xf32>
    %cst_12 = arith.constant dense<0.000000e+00> : vector<16x128xf32>
    %23 = tpu.matmul %22, %4, %cst_12 {dimension_numbers = #tpu.dot_dimension_numbers<[1], [0], [0], [1], [0, 0, 1, 1], [], []>} : vector<16x128xf32>, vector<128x128xf32>, vector<16x128xf32> -> vector<16x128xf32>
    %cst_13 = arith.constant 1.000000e+00 : f32
    %24 = vector.broadcast %cst_13 : f32 to vector<16x128xf32>
    %25 = arith.addf %24, %23 : vector<16x128xf32>
    %c1_i32_14 = arith.constant 1 : i32
    %26 = arith.index_cast %c1_i32_14 : i32 to index
    %c0_15 = arith.constant 0 : index
    %c0_16 = arith.constant 0 : index
    %27 = vector.load %arg4[%26, %c0_15, %c0_16] : memref<7x4x4xbf16, #tpu.memory_space<vmem>>, vector<1x4x4xbf16>
    %28 = vector.shape_cast %27 : vector<1x4x4xbf16> to vector<4x4xbf16>
    %cst_17 = arith.constant dense<0.000000e+00> : vector<4x512xf32>
    %29 = tpu.matmul %28, %3, %cst_17 {dimension_numbers = #tpu.dot_dimension_numbers<[1], [0], [0], [1], [0, 0, 1, 1], [], []>} : vector<4x4xbf16>, vector<4x512xbf16>, vector<4x512xf32> -> vector<4x512xf32>
    %30 = vector.shape_cast %29 : vector<4x512xf32> to vector<16x128xf32>
    %c1_i32_18 = arith.constant 1 : i32
    %31 = tpu.dynamic_rotate %25 by %c1_i32_18 dim 1 : vector<16x128xf32>, i32 -> vector<16x128xf32>
    %cst_19 = arith.constant 1.000000e+00 : f32
    %32 = vector.shape_cast %7 : vector<1x128xi1> to vector<1x128xi1>
    %33 = vector.broadcast %32 : vector<1x128xi1> to vector<16x128xi1>
    %34 = vector.broadcast %cst_19 : f32 to vector<16x128xf32>
    %35 = arith.select %33, %34, %31 : vector<16x128xi1>, vector<16x128xf32>
    %cst_20 = arith.constant 1.000000e+00 : f32
    %36 = vector.broadcast %cst_20 : f32 to vector<16x128xf32>
    %37 = arith.subf %30, %36 : vector<16x128xf32>
    %38 = arith.mulf %35, %37 : vector<16x128xf32>
    %39 = arith.addf %25, %38 : vector<16x128xf32>
    %cst_21 = arith.constant dense<0.000000e+00> : vector<16x128xf32>
    %40 = tpu.matmul %39, %4, %cst_21 {dimension_numbers = #tpu.dot_dimension_numbers<[1], [0], [0], [1], [0, 0, 1, 1], [], []>} : vector<16x128xf32>, vector<128x128xf32>, vector<16x128xf32> -> vector<16x128xf32>
    %cst_22 = arith.constant 1.000000e+00 : f32
    %41 = vector.broadcast %cst_22 : f32 to vector<16x128xf32>
    %42 = arith.addf %41, %40 : vector<16x128xf32>
    %c2_i32 = arith.constant 2 : i32
    %43 = arith.index_cast %c2_i32 : i32 to index
    %c0_23 = arith.constant 0 : index
    %c0_24 = arith.constant 0 : index
    %44 = vector.load %arg4[%43, %c0_23, %c0_24] : memref<7x4x4xbf16, #tpu.memory_space<vmem>>, vector<1x4x4xbf16>
    %45 = vector.shape_cast %44 : vector<1x4x4xbf16> to vector<4x4xbf16>
    %cst_25 = arith.constant dense<0.000000e+00> : vector<4x512xf32>
    %46 = tpu.matmul %45, %3, %cst_25 {dimension_numbers = #tpu.dot_dimension_numbers<[1], [0], [0], [1], [0, 0, 1, 1], [], []>} : vector<4x4xbf16>, vector<4x512xbf16>, vector<4x512xf32> -> vector<4x512xf32>
    %47 = vector.shape_cast %46 : vector<4x512xf32> to vector<16x128xf32>
    %c1_i32_26 = arith.constant 1 : i32
    %48 = tpu.dynamic_rotate %42 by %c1_i32_26 dim 1 : vector<16x128xf32>, i32 -> vector<16x128xf32>
    %cst_27 = arith.constant 1.000000e+00 : f32
    %49 = vector.shape_cast %7 : vector<1x128xi1> to vector<1x128xi1>
    %50 = vector.broadcast %49 : vector<1x128xi1> to vector<16x128xi1>
    %51 = vector.broadcast %cst_27 : f32 to vector<16x128xf32>
    %52 = arith.select %50, %51, %48 : vector<16x128xi1>, vector<16x128xf32>
    %cst_28 = arith.constant 1.000000e+00 : f32
    %53 = vector.broadcast %cst_28 : f32 to vector<16x128xf32>
    %54 = arith.subf %47, %53 : vector<16x128xf32>
    %55 = arith.mulf %52, %54 : vector<16x128xf32>
    %56 = arith.addf %42, %55 : vector<16x128xf32>
    %cst_29 = arith.constant dense<0.000000e+00> : vector<16x128xf32>
    %57 = tpu.matmul %56, %4, %cst_29 {dimension_numbers = #tpu.dot_dimension_numbers<[1], [0], [0], [1], [0, 0, 1, 1], [], []>} : vector<16x128xf32>, vector<128x128xf32>, vector<16x128xf32> -> vector<16x128xf32>
    %cst_30 = arith.constant 1.000000e+00 : f32
    %58 = vector.broadcast %cst_30 : f32 to vector<16x128xf32>
    %59 = arith.addf %58, %57 : vector<16x128xf32>
    %c3_i32 = arith.constant 3 : i32
    %60 = arith.index_cast %c3_i32 : i32 to index
    %c0_31 = arith.constant 0 : index
    %c0_32 = arith.constant 0 : index
    %61 = vector.load %arg4[%60, %c0_31, %c0_32] : memref<7x4x4xbf16, #tpu.memory_space<vmem>>, vector<1x4x4xbf16>
    %62 = vector.shape_cast %61 : vector<1x4x4xbf16> to vector<4x4xbf16>
    %cst_33 = arith.constant dense<0.000000e+00> : vector<4x512xf32>
    %63 = tpu.matmul %62, %3, %cst_33 {dimension_numbers = #tpu.dot_dimension_numbers<[1], [0], [0], [1], [0, 0, 1, 1], [], []>} : vector<4x4xbf16>, vector<4x512xbf16>, vector<4x512xf32> -> vector<4x512xf32>
    %64 = vector.shape_cast %63 : vector<4x512xf32> to vector<16x128xf32>
    %c1_i32_34 = arith.constant 1 : i32
    %65 = tpu.dynamic_rotate %59 by %c1_i32_34 dim 1 : vector<16x128xf32>, i32 -> vector<16x128xf32>
    %cst_35 = arith.constant 1.000000e+00 : f32
    %66 = vector.shape_cast %7 : vector<1x128xi1> to vector<1x128xi1>
    %67 = vector.broadcast %66 : vector<1x128xi1> to vector<16x128xi1>
    %68 = vector.broadcast %cst_35 : f32 to vector<16x128xf32>
    %69 = arith.select %67, %68, %65 : vector<16x128xi1>, vector<16x128xf32>
    %cst_36 = arith.constant 1.000000e+00 : f32
    %70 = vector.broadcast %cst_36 : f32 to vector<16x128xf32>
    %71 = arith.subf %64, %70 : vector<16x128xf32>
    %72 = arith.mulf %69, %71 : vector<16x128xf32>
    %73 = arith.addf %59, %72 : vector<16x128xf32>
    %cst_37 = arith.constant dense<0.000000e+00> : vector<16x128xf32>
    %74 = tpu.matmul %73, %4, %cst_37 {dimension_numbers = #tpu.dot_dimension_numbers<[1], [0], [0], [1], [0, 0, 1, 1], [], []>} : vector<16x128xf32>, vector<128x128xf32>, vector<16x128xf32> -> vector<16x128xf32>
    %cst_38 = arith.constant 1.000000e+00 : f32
    %75 = vector.broadcast %cst_38 : f32 to vector<16x128xf32>
    %76 = arith.addf %75, %74 : vector<16x128xf32>
    %c4_i32 = arith.constant 4 : i32
    %77 = arith.index_cast %c4_i32 : i32 to index
    %c0_39 = arith.constant 0 : index
    %c0_40 = arith.constant 0 : index
    %78 = vector.load %arg4[%77, %c0_39, %c0_40] : memref<7x4x4xbf16, #tpu.memory_space<vmem>>, vector<1x4x4xbf16>
    %79 = vector.shape_cast %78 : vector<1x4x4xbf16> to vector<4x4xbf16>
    %cst_41 = arith.constant dense<0.000000e+00> : vector<4x512xf32>
    %80 = tpu.matmul %79, %3, %cst_41 {dimension_numbers = #tpu.dot_dimension_numbers<[1], [0], [0], [1], [0, 0, 1, 1], [], []>} : vector<4x4xbf16>, vector<4x512xbf16>, vector<4x512xf32> -> vector<4x512xf32>
    %81 = vector.shape_cast %80 : vector<4x512xf32> to vector<16x128xf32>
    %c1_i32_42 = arith.constant 1 : i32
    %82 = tpu.dynamic_rotate %76 by %c1_i32_42 dim 1 : vector<16x128xf32>, i32 -> vector<16x128xf32>
    %cst_43 = arith.constant 1.000000e+00 : f32
    %83 = vector.shape_cast %7 : vector<1x128xi1> to vector<1x128xi1>
    %84 = vector.broadcast %83 : vector<1x128xi1> to vector<16x128xi1>
    %85 = vector.broadcast %cst_43 : f32 to vector<16x128xf32>
    %86 = arith.select %84, %85, %82 : vector<16x128xi1>, vector<16x128xf32>
    %cst_44 = arith.constant 1.000000e+00 : f32
    %87 = vector.broadcast %cst_44 : f32 to vector<16x128xf32>
    %88 = arith.subf %81, %87 : vector<16x128xf32>
    %89 = arith.mulf %86, %88 : vector<16x128xf32>
    %90 = arith.addf %76, %89 : vector<16x128xf32>
    %cst_45 = arith.constant dense<0.000000e+00> : vector<16x128xf32>
    %91 = tpu.matmul %90, %4, %cst_45 {dimension_numbers = #tpu.dot_dimension_numbers<[1], [0], [0], [1], [0, 0, 1, 1], [], []>} : vector<16x128xf32>, vector<128x128xf32>, vector<16x128xf32> -> vector<16x128xf32>
    %cst_46 = arith.constant 1.000000e+00 : f32
    %92 = vector.broadcast %cst_46 : f32 to vector<16x128xf32>
    %93 = arith.addf %92, %91 : vector<16x128xf32>
    %c5_i32 = arith.constant 5 : i32
    %94 = arith.index_cast %c5_i32 : i32 to index
    %c0_47 = arith.constant 0 : index
    %c0_48 = arith.constant 0 : index
    %95 = vector.load %arg4[%94, %c0_47, %c0_48] : memref<7x4x4xbf16, #tpu.memory_space<vmem>>, vector<1x4x4xbf16>
    %96 = vector.shape_cast %95 : vector<1x4x4xbf16> to vector<4x4xbf16>
    %cst_49 = arith.constant dense<0.000000e+00> : vector<4x512xf32>
    %97 = tpu.matmul %96, %3, %cst_49 {dimension_numbers = #tpu.dot_dimension_numbers<[1], [0], [0], [1], [0, 0, 1, 1], [], []>} : vector<4x4xbf16>, vector<4x512xbf16>, vector<4x512xf32> -> vector<4x512xf32>
    %98 = vector.shape_cast %97 : vector<4x512xf32> to vector<16x128xf32>
    %c1_i32_50 = arith.constant 1 : i32
    %99 = tpu.dynamic_rotate %93 by %c1_i32_50 dim 1 : vector<16x128xf32>, i32 -> vector<16x128xf32>
    %cst_51 = arith.constant 1.000000e+00 : f32
    %100 = vector.shape_cast %7 : vector<1x128xi1> to vector<1x128xi1>
    %101 = vector.broadcast %100 : vector<1x128xi1> to vector<16x128xi1>
    %102 = vector.broadcast %cst_51 : f32 to vector<16x128xf32>
    %103 = arith.select %101, %102, %99 : vector<16x128xi1>, vector<16x128xf32>
    %cst_52 = arith.constant 1.000000e+00 : f32
    %104 = vector.broadcast %cst_52 : f32 to vector<16x128xf32>
    %105 = arith.subf %98, %104 : vector<16x128xf32>
    %106 = arith.mulf %103, %105 : vector<16x128xf32>
    %107 = arith.addf %93, %106 : vector<16x128xf32>
    %cst_53 = arith.constant dense<0.000000e+00> : vector<16x128xf32>
    %108 = tpu.matmul %107, %4, %cst_53 {dimension_numbers = #tpu.dot_dimension_numbers<[1], [0], [0], [1], [0, 0, 1, 1], [], []>} : vector<16x128xf32>, vector<128x128xf32>, vector<16x128xf32> -> vector<16x128xf32>
    %cst_54 = arith.constant 1.000000e+00 : f32
    %109 = vector.broadcast %cst_54 : f32 to vector<16x128xf32>
    %110 = arith.addf %109, %108 : vector<16x128xf32>
    %c6_i32 = arith.constant 6 : i32
    %111 = arith.index_cast %c6_i32 : i32 to index
    %c0_55 = arith.constant 0 : index
    %c0_56 = arith.constant 0 : index
    %112 = vector.load %arg4[%111, %c0_55, %c0_56] : memref<7x4x4xbf16, #tpu.memory_space<vmem>>, vector<1x4x4xbf16>
    %113 = vector.shape_cast %112 : vector<1x4x4xbf16> to vector<4x4xbf16>
    %cst_57 = arith.constant dense<0.000000e+00> : vector<4x512xf32>
    %114 = tpu.matmul %113, %3, %cst_57 {dimension_numbers = #tpu.dot_dimension_numbers<[1], [0], [0], [1], [0, 0, 1, 1], [], []>} : vector<4x4xbf16>, vector<4x512xbf16>, vector<4x512xf32> -> vector<4x512xf32>
    %115 = vector.shape_cast %114 : vector<4x512xf32> to vector<16x128xf32>
    %c1_i32_58 = arith.constant 1 : i32
    %116 = tpu.dynamic_rotate %110 by %c1_i32_58 dim 1 : vector<16x128xf32>, i32 -> vector<16x128xf32>
    %cst_59 = arith.constant 1.000000e+00 : f32
    %117 = vector.shape_cast %7 : vector<1x128xi1> to vector<1x128xi1>
    %118 = vector.broadcast %117 : vector<1x128xi1> to vector<16x128xi1>
    %119 = vector.broadcast %cst_59 : f32 to vector<16x128xf32>
    %120 = arith.select %118, %119, %116 : vector<16x128xi1>, vector<16x128xf32>
    %cst_60 = arith.constant 1.000000e+00 : f32
    %121 = vector.broadcast %cst_60 : f32 to vector<16x128xf32>
    %122 = arith.subf %115, %121 : vector<16x128xf32>
    %123 = arith.mulf %120, %122 : vector<16x128xf32>
    %124 = arith.addf %110, %123 : vector<16x128xf32>
    %cst_61 = arith.constant dense<0.000000e+00> : vector<16x128xf32>
    %125 = tpu.matmul %124, %4, %cst_61 {dimension_numbers = #tpu.dot_dimension_numbers<[1], [0], [0], [1], [0, 0, 1, 1], [], []>} : vector<16x128xf32>, vector<128x128xf32>, vector<16x128xf32> -> vector<16x128xf32>
    %cst_62 = arith.constant 1.000000e+00 : f32
    %126 = vector.broadcast %cst_62 : f32 to vector<16x128xf32>
    %127 = arith.addf %126, %125 : vector<16x128xf32>
    %c7_i32 = arith.constant 7 : i32
    %c0_63 = arith.constant 0 : index
    %c0_64 = arith.constant 0 : index
    %128 = vector.load %arg7[%c0_63, %c0_64] : memref<16x128xf32, #tpu.memory_space<vmem>>, vector<16x128xf32>
    tpu.vector_store %arg7[%c0_63, %c0_64], %127 {strides = array<i32>} : memref<16x128xf32, #tpu.memory_space<vmem>>, vector<16x128xf32>,
    %c0_i32_65 = arith.constant 0 : i32
    %129 = arith.cmpi eq, %arg1, %c0_i32_65 : i32
    %130 = arith.extui %129 : i1 to i32
    %c0_i32_66 = arith.constant 0 : i32
    %131 = arith.cmpi ne, %130, %c0_i32_66 : i32
    scf.if %131 {
      %132 = vector.extract_strided_slice %127 {offsets = [0, 6], sizes = [16, 1], strides = [1, 1]} : vector<16x128xf32> to vector<16x1xf32>
      %c0_67 = arith.constant 0 : index
      %c0_68 = arith.constant 0 : index
      %c0_69 = arith.constant 0 : index
      %133 = vector.load %arg6[%c0_67, %c0_68, %c0_69] : memref<1x16x1xf32, #tpu.memory_space<vmem>>, vector<1x16x1xf32>
      %134 = vector.shape_cast %133 : vector<1x16x1xf32> to vector<16x1xf32>
      %135 = vector.shape_cast %132 : vector<16x1xf32> to vector<1x16x1xf32>
      tpu.vector_store %arg6[%c0_67, %c0_68, %c0_69], %135 {strides = array<i32>} : memref<1x16x1xf32, #tpu.memory_space<vmem>>, vector<1x16x1xf32>,
    } else {
    }
    return
  }
  func.func @transform_0(%arg0: i32, %arg1: i32, %arg2: memref<1xi32, #tpu.memory_space<smem>>, %arg3: memref<1xi32, #tpu.memory_space<smem>>) -> (i32, i32, i32) {
    %0 = arith.index_cast %arg0 : i32 to index
    %1 = memref.load %arg2[%0] : memref<1xi32, #tpu.memory_space<smem>>
    %c0_i32 = arith.constant 0 : i32
    %c0_i32_0 = arith.constant 0 : i32
    return %arg1, %1, %c0_i32 : i32, i32, i32
  }
  func.func @transform_1(%arg0: i32, %arg1: i32, %arg2: memref<1xi32, #tpu.memory_space<smem>>, %arg3: memref<1xi32, #tpu.memory_space<smem>>) -> (i32, i32) {
    %0 = arith.index_cast %arg0 : i32 to index
    %1 = memref.load %arg3[%0] : memref<1xi32, #tpu.memory_space<smem>>
    %c0_i32 = arith.constant 0 : i32
    %c0_i32_0 = arith.constant 0 : i32
    return %c0_i32, %1 : i32, i32
  }
  func.func @transform_2(%arg0: i32, %arg1: i32, %arg2: memref<1xi32, #tpu.memory_space<smem>>, %arg3: memref<1xi32, #tpu.memory_space<smem>>) -> (i32, i32, i32) {
    %c0_i32 = arith.constant 0 : i32
    %c0_i32_0 = arith.constant 0 : i32
    %c0_i32_1 = arith.constant 0 : i32
    return %arg0, %c0_i32, %c0_i32_0 : i32, i32, i32
  }
}

</mosaic_0001>

<llo_original>
// kernel: sig_mmd.1
$region0: #{sig_mmd.1}
  #allocation0 [shape = 'u32[]', space=smem, size = 0x4, offset = 0x4, fixed_abs, tag = 'smem constant byte address 0x4 - core index']
  #allocation1 [shape = 'u32[72,128]{1,0:T(1,128)}', space=vmem, size = 0x9000, scoped, tag = 'internal scratch']
  #allocation2 [shape = 'f32[16,128]{1,0:T(8,128)}', space=vmem, size = 0x2000, scoped, tag = 'scratch operand']
  #allocation3 [shape = 'f32[128,128]{1,0:T(8,128)}', space=vmem, size = 0x10000, scoped, tag = 'scratch operand']
  #allocation4 [shape = 's32[1]{0}', space=sflag, size = 0x4, scoped, tag = 'scoped memory for sig_mmd.1']
  #allocation5 [shape = 's32[1]{0:T(128)S(6)}', space=smem, size = 0x200, scoped, tag = 'prefetched SMEM operand 0']
  #allocation6 [shape = 's32[1]{0:T(128)S(6)}', space=smem, size = 0x200, scoped, tag = 'prefetched SMEM operand 1']
  %s0 = inlined_call_operand.<no memory space> [shape: s32[1], index: 0, kind: input, shape index: {}, may-alias: {0,1}]
  %s1 = inlined_call_operand.<no memory space> [shape: s32[1], index: 1, kind: input, shape index: {}, may-alias: {0,1}]
  %s2 = inlined_call_operand.vmem [shape: bf16[7,4,4], index: 2, kind: input, shape index: {}]
  %s3 = inlined_call_operand.vmem [shape: bf16[4,512], index: 3, kind: input, shape index: {}]
  %s4 = inlined_call_operand.vmem [shape: f32[1,16,1], index: 4, kind: output, shape index: {}]
  %s5 = sld [smem:[#allocation0]]
  $region26: #{sig_mmd.1} parent=0
    _
  %s7 = ssub.s32 1, %s5
  %s8 = scalar_select 0, %s7, %s5
  %9 = sst [smem:[#allocation5]] %s0
  %10 = sst [smem:[#allocation6]] %s1
  // Predicated region
  $region2: #{sig_mmd.1} parent=0 // pred_check
    _
  $region3: #{sig_mmd.1} parent=0 // pred_check_branch
    %12 = sbr.rel (0) target = $region5
  $region4: #{sig_mmd.1} parent=0 // pred_region
    %s13 = sld [smem:[#allocation5]]
    %p14 = scmp.lt.s32.totalorder %s13, 0
    %s15 = scalar_select %p14, %s13, 0
    %s16 = smul.addr %s15, 2
    %s17 = scalar_lea.vmem %s2, %s16
    %s18 = sld [smem:[#allocation5]]
  $region5: #{sig_mmd.1} parent=0 // pred_fallthru
    _
  // Predicated region
  $region6: #{sig_mmd.1} parent=0 // pred_check
    _
  $region7: #{sig_mmd.1} parent=0 // pred_check_branch
    %20 = sbr.rel (0) target = $region9
  $region8: #{sig_mmd.1} parent=0 // pred_region
    %s21 = sld [smem:[#allocation6]]
    %s22 = smul.u32 4, %s21
    %p23 = scmp.lt.s32.totalorder %s22, 3
    %s24 = scalar_select %p23, %s22, 3
    %s25 = smul.addr %s24, 2
    %s26 = scalar_lea.vmem %s3, %s25
    %s27 = sld [smem:[#allocation6]]
    %s28 = smul.u32 4, %s27
  $region9: #{sig_mmd.1} parent=0 // pred_fallthru
    _
  %s29 = sld [smem:[#allocation5]]
  %p30 = scmp.lt.s32.totalorder %s29, 0
  %s31 = scalar_select %p30, %s29, 0
  %s32 = smul.addr %s31, 2
  %s33 = scalar_lea.vmem %s2, %s32
  %s34 = sld [smem:[#allocation6]]
  %s35 = smul.u32 4, %s34
  %p36 = scmp.lt.s32.totalorder %s35, 3
  %s37 = scalar_select %p36, %s35, 3
  %s38 = smul.addr %s37, 2
  %s39 = scalar_lea.vmem %s3, %s38
  %s40 = sld [smem:[#allocation5]]
  %p41 = scmp.lt.s32.totalorder %s40, 0
  %s42 = scalar_select %p41, %s40, 0
  %s43 = smul.addr %s42, 2
  %s44 = scalar_lea.vmem %s2, %s43
  %s45 = sld [smem:[#allocation5]]
  %s46 = sld [smem:[#allocation6]]
  %s47 = smul.u32 4, %s46
  %p48 = scmp.lt.s32.totalorder %s47, 3
  %s49 = scalar_select %p48, %s47, 3
  %s50 = smul.addr %s49, 2
  %s51 = scalar_lea.vmem %s3, %s50
  %s52 = sld [smem:[#allocation6]]
  %s53 = smul.u32 4, %s52
  %p55 = scmp.eq.s32.totalorder 0, 0
  // Predicated region
  $region10: #{sig_mmd.1} parent=0 // pred_check
    %p56 = pneg %p55
  $region11: #{sig_mmd.1} parent=0 // pred_check_branch
    %58 = sbr.rel (%p56) target = $region13
  $region12: #{sig_mmd.1} parent=0 // pred_region
    %59 = vst [vmem:[#allocation2] sm:$0xff] 1.0
    %60 = vst [vmem:[#allocation2 + $0x8] sm:$0xff] 1.0
    %v61 = vlaneseq
    %v62 = vshrl.u32 %v61, 7
    %v63 = vadd.s32 %v62, 8
    %v64 = vadd.s32 %v62, 16
    %v65 = vadd.s32 %v62, 24
    %v66 = vadd.s32 %v62, 32
    %v67 = vadd.s32 %v62, 40
    %v68 = vadd.s32 %v62, 48
    %v69 = vadd.s32 %v62, 56
    %v70 = vadd.s32 %v62, 64
    %v71 = vadd.s32 %v62, 72
    %v72 = vadd.s32 %v62, 80
    %v73 = vadd.s32 %v62, 88
    %v74 = vadd.s32 %v62, 96
    %v75 = vadd.s32 %v62, 104
    %v76 = vadd.s32 %v62, 112
    %v77 = vadd.s32 %v62, 120
    %v78 = vlaneseq
    %v79 = vand.u32 %v78, 127
    %vm80 = vcmp.le.s32.totalorder %v62, %v79
    %vm81 = vcmp.le.s32.totalorder %v63, %v79
    %vm82 = vcmp.le.s32.totalorder %v64, %v79
    %vm83 = vcmp.le.s32.totalorder %v65, %v79
    %vm84 = vcmp.le.s32.totalorder %v66, %v79
    %vm85 = vcmp.le.s32.totalorder %v67, %v79
    %vm86 = vcmp.le.s32.totalorder %v68, %v79
    %vm87 = vcmp.le.s32.totalorder %v69, %v79
    %vm88 = vcmp.le.s32.totalorder %v70, %v79
    %vm89 = vcmp.le.s32.totalorder %v71, %v79
    %vm90 = vcmp.le.s32.totalorder %v72, %v79
    %vm91 = vcmp.le.s32.totalorder %v73, %v79
    %vm92 = vcmp.le.s32.totalorder %v74, %v79
    %vm93 = vcmp.le.s32.totalorder %v75, %v79
    %vm94 = vcmp.le.s32.totalorder %v76, %v79
    %vm95 = vcmp.le.s32.totalorder %v77, %v79
    %v96 = vsel %vm80, 1, 0
    %v97 = vsel %vm81, 1, 0
    %v98 = vsel %vm82, 1, 0
    %v99 = vsel %vm83, 1, 0
    %v100 = vsel %vm84, 1, 0
    %v101 = vsel %vm85, 1, 0
    %v102 = vsel %vm86, 1, 0
    %v103 = vsel %vm87, 1, 0
    %v104 = vsel %vm88, 1, 0
    %v105 = vsel %vm89, 1, 0
    %v106 = vsel %vm90, 1, 0
    %v107 = vsel %vm91, 1, 0
    %v108 = vsel %vm92, 1, 0
    %v109 = vsel %vm93, 1, 0
    %v110 = vsel %vm94, 1, 0
    %v111 = vsel %vm95, 1, 0
    %v112 = vcvt.s32.f32 %v96
    %v113 = vcvt.s32.f32 %v97
    %v114 = vcvt.s32.f32 %v98
    %v115 = vcvt.s32.f32 %v99
    %v116 = vcvt.s32.f32 %v100
    %v117 = vcvt.s32.f32 %v101
    %v118 = vcvt.s32.f32 %v102
    %v119 = vcvt.s32.f32 %v103
    %v120 = vcvt.s32.f32 %v104
    %v121 = vcvt.s32.f32 %v105
    %v122 = vcvt.s32.f32 %v106
    %v123 = vcvt.s32.f32 %v107
    %v124 = vcvt.s32.f32 %v108
    %v125 = vcvt.s32.f32 %v109
    %v126 = vcvt.s32.f32 %v110
    %v127 = vcvt.s32.f32 %v111
    %128 = vst [vmem:[#allocation3] sm:$0xff] %v112
    %129 = vst [vmem:[#allocation3 + $0x8] sm:$0xff] %v113
    %130 = vst [vmem:[#allocation3 + $0x10] sm:$0xff] %v114
    %131 = vst [vmem:[#allocation3 + $0x18] sm:$0xff] %v115
    %132 = vst [vmem:[#allocation3 + $0x20] sm:$0xff] %v116
    %133 = vst [vmem:[#allocation3 + $0x28] sm:$0xff] %v117
    %134 = vst [vmem:[#allocation3 + $0x30] sm:$0xff] %v118
    %135 = vst [vmem:[#allocation3 + $0x38] sm:$0xff] %v119
    %136 = vst [vmem:[#allocation3 + $0x40] sm:$0xff] %v120
    %137 = vst [vmem:[#allocation3 + $0x48] sm:$0xff] %v121
    %138 = vst [vmem:[#allocation3 + $0x50] sm:$0xff] %v122
    %139 = vst [vmem:[#allocation3 + $0x58] sm:$0xff] %v123
    %140 = vst [vmem:[#allocation3 + $0x60] sm:$0xff] %v124
    %141 = vst [vmem:[#allocation3 + $0x68] sm:$0xff] %v125
    %142 = vst [vmem:[#allocation3 + $0x70] sm:$0xff] %v126
    %143 = vst [vmem:[#allocation3 + $0x78] sm:$0xff] %v127
  $region13: #{sig_mmd.1} parent=0 // pred_fallthru
    _
  %v144 = vld [vmem:[%s51] sm:$0xff]
  %v145 = vld [vmem:[#allocation3] sm:$0xff]
  %v146 = vld [vmem:[#allocation3 + $0x8] sm:$0xff]
  %v147 = vld [vmem:[#allocation3 + $0x10] sm:$0xff]
  %v148 = vld [vmem:[#allocation3 + $0x18] sm:$0xff]
  %v149 = vld [vmem:[#allocation3 + $0x20] sm:$0xff]
  %v150 = vld [vmem:[#allocation3 + $0x28] sm:$0xff]
  %v151 = vld [vmem:[#allocation3 + $0x30] sm:$0xff]
  %v152 = vld [vmem:[#allocation3 + $0x38] sm:$0xff]
  %v153 = vld [vmem:[#allocation3 + $0x40] sm:$0xff]
  %v154 = vld [vmem:[#allocation3 + $0x48] sm:$0xff]
  %v155 = vld [vmem:[#allocation3 + $0x50] sm:$0xff]
  %v156 = vld [vmem:[#allocation3 + $0x58] sm:$0xff]
  %v157 = vld [vmem:[#allocation3 + $0x60] sm:$0xff]
  %v158 = vld [vmem:[#allocation3 + $0x68] sm:$0xff]
  %v159 = vld [vmem:[#allocation3 + $0x70] sm:$0xff]
  %v160 = vld [vmem:[#allocation3 + $0x78] sm:$0xff]
  %v161 = vlaneseq
  %v162 = vand.u32 %v161, 127
  %vm163 = vcmp.eq.s32.totalorder %v162, 0
  %v164 = vld [vmem:[#allocation2] sm:$0xff]
  %v165 = vld [vmem:[#allocation2 + $0x8] sm:$0xff]
  %v166 = vld [vmem:[%s44] sm:$0x3]
  %168 = vst [vmem:[#allocation1] ss:$4 sm:$0xff] %v144
  %v169 = vld.sshfl [vmem:[#allocation1] sm:$0xff pattern:$0x73625140]
  %v170 = vld.sshfl [vmem:[#allocation1 + $0x8] sm:$0xff pattern:$0x73625140]
  %v171 = vld.sshfl [vmem:[#allocation1 + $0x10] sm:$0xff pattern:$0x73625140]
  %v172 = vld.sshfl [vmem:[#allocation1 + $0x18] sm:$0xff pattern:$0x73625140]
  %vm173 = vcmask 31744
  %v175 = vsel %vm173, %v166, 0
  %vm177 = vcmask 1041408
  %v178 = vsel %vm177, %v169, 0
  %v180 = vsel %vm177, %v170, 0
  %v182 = vsel %vm177, %v171, 0
  %v184 = vsel %vm177, %v172, 0
  %186 = vmatpush.bf16.msra.mxu0 0
  %187 = vmatpush.bf16.msra.mxu0 0
  %188 = vmatpush.bf16.msra.mxu0 0
  %189 = vmatpush.bf16.msra.mxu0 0
  %190 = vmatpush.bf16.msra.mxu0 0
  %191 = vmatpush.bf16.msra.mxu0 0
  %192 = vmatpush.bf16.msra.mxu0 0
  %193 = vmatpush.bf16.msra.mxu0 %v178
  %194 = vmatmul.bf16.gmra.mxu0 %v175
  %v195 = vpop.f32.mrf.mxu0
  %v196 = vadd.f32 0.0, %v195
  %v197 = vpop.f32.mrf.mxu0
  %198 = vdwg.mxu0
  %199 = vmatpush.bf16.msra.mxu0 0
  %200 = vmatpush.bf16.msra.mxu0 0
  %201 = vmatpush.bf16.msra.mxu0 0
  %202 = vmatpush.bf16.msra.mxu0 0
  %203 = vmatpush.bf16.msra.mxu0 0
  %204 = vmatpush.bf16.msra.mxu0 0
  %205 = vmatpush.bf16.msra.mxu0 0
  %206 = vmatpush.bf16.msra.mxu0 %v180
  %207 = vmatmul.bf16.gmra.mxu0 %v175
  %v208 = vpop.f32.mrf.mxu0
  %v209 = vadd.f32 0.0, %v208
  %v210 = vpop.f32.mrf.mxu0
  %211 = vdwg.mxu0
  %212 = vmatpush.bf16.msra.mxu0 0
  %213 = vmatpush.bf16.msra.mxu0 0
  %214 = vmatpush.bf16.msra.mxu0 0
  %215 = vmatpush.bf16.msra.mxu0 0
  %216 = vmatpush.bf16.msra.mxu0 0
  %217 = vmatpush.bf16.msra.mxu0 0
  %218 = vmatpush.bf16.msra.mxu0 0
  %219 = vmatpush.bf16.msra.mxu0 %v182
  %220 = vmatmul.bf16.gmra.mxu0 %v175
  %v221 = vpop.f32.mrf.mxu0
  %v222 = vadd.f32 0.0, %v221
  %v223 = vpop.f32.mrf.mxu0
  %224 = vdwg.mxu0
  %225 = vmatpush.bf16.msra.mxu0 0
  %226 = vmatpush.bf16.msra.mxu0 0
  %227 = vmatpush.bf16.msra.mxu0 0
  %228 = vmatpush.bf16.msra.mxu0 0
  %229 = vmatpush.bf16.msra.mxu0 0
  %230 = vmatpush.bf16.msra.mxu0 0
  %231 = vmatpush.bf16.msra.mxu0 0
  %232 = vmatpush.bf16.msra.mxu0 %v184
  %233 = vmatmul.bf16.gmra.mxu0 %v175
  %v234 = vpop.f32.mrf.mxu0
  %v235 = vadd.f32 0.0, %v234
  %v236 = vpop.f32.mrf.mxu0
  %237 = vdwg.mxu0
  %v242 = vrot.slane %v209, 6
  %v243 = vrot.slane %v222, 4
  %v244 = vrot.slane %v235, 2
  %v245 = vsel %vm177, %v196, %v242
  %vm246 = vcmask 1045508
  %v247 = vsel %vm246, %v243, %v244
  %vm248 = vcmask 1043456
  %v249 = vsel %vm248, %v245, %v247
  %vm250 = vcmask 1043458
  %v251 = vsel %vm250, %v196, %v242
  %vm252 = vcmask 1045504
  %v253 = vsel %vm252, %v244, %v243
  %vm254 = vcmask 1045506
  %v255 = vsel %vm254, %v251, %v253
  %v256 = vrot.slane %v255, 2
  %v260 = vunpack.c.l.s4 1966171168
  %v261 = vunpack.c.0.s8 %v260
  %v262 = vperm.slane %v249, %v261
  %v264 = vunpack.c.l.s4 1966171168
  %v265 = vunpack.c.0.s8 %v264
  %v266 = vperm.slane %v256, %v265
  %267 = vrot.lane.b32.xlu0 %v164, 1
  %v268 = vpop.permute.xlu0 %267
  %269 = vrot.lane.b32.xlu0 %v165, 1
  %v270 = vpop.permute.xlu0 %269
  %v271 = vsel %vm163, 1, 0
  %vm272 = vcmp.eq.s32.totalorder %v271, 1
  %v273 = vsel %vm272, 1.0, %v268
  %v274 = vsel %vm272, 1.0, %v270
  %v275 = vsub.f32 %v262, 1.0
  %v276 = vsub.f32 %v266, 1.0
  %v277 = vmul.f32 %v273, %v275
  %v278 = vmul.f32 %v274, %v276
  %v279 = vadd.f32 %v164, %v277
  %v280 = vadd.f32 %v165, %v278
  %281 = vmatpush.msra.mxu0 %v160
  %282 = vmatpush.msra.mxu0 %v159
  %283 = vmatpush.msra.mxu0 %v158
  %284 = vmatpush.msra.mxu0 %v157
  %285 = vmatpush.msra.mxu0 %v156
  %286 = vmatpush.msra.mxu0 %v155
  %287 = vmatpush.msra.mxu0 %v154
  %288 = vmatpush.msra.mxu0 %v153
  %289 = vmatpush.msra.mxu0 %v152
  %290 = vmatpush.msra.mxu0 %v151
  %291 = vmatpush.msra.mxu0 %v150
  %292 = vmatpush.msra.mxu0 %v149
  %293 = vmatpush.msra.mxu0 %v148
  %294 = vmatpush.msra.mxu0 %v147
  %295 = vmatpush.msra.mxu0 %v146
  %296 = vmatpush.msra.mxu0 %v145
  %297 = vmatmul.f32.gmra.mxu0 %v279
  %v298 = vpop.f32.mrf.mxu0
  %v299 = vadd.f32 1.0, %v298
  %300 = vmatmul.f32.gmra.mxu0 %v280
  %v301 = vpop.f32.mrf.mxu0
  %v302 = vadd.f32 1.0, %v301
  %303 = vdwg.mxu0
  %s304 = scalar_lea.vmem %s44, 2
  %v305 = vld [vmem:[%s304] sm:$0x3]
  %306 = vst [vmem:[#allocation1] ss:$4 sm:$0xff] %v144
  %v307 = vld.sshfl [vmem:[#allocation1] sm:$0xff pattern:$0x73625140]
  %v308 = vld.sshfl [vmem:[#allocation1 + $0x8] sm:$0xff pattern:$0x73625140]
  %v309 = vld.sshfl [vmem:[#allocation1 + $0x10] sm:$0xff pattern:$0x73625140]
  %v310 = vld.sshfl [vmem:[#allocation1 + $0x18] sm:$0xff pattern:$0x73625140]
  %v312 = vsel %vm173, %v305, 0
  %v314 = vsel %vm177, %v307, 0
  %v316 = vsel %vm177, %v308, 0
  %v318 = vsel %vm177, %v309, 0
  %v320 = vsel %vm177, %v310, 0
  %322 = vmatpush.bf16.msra.mxu0 0
  %323 = vmatpush.bf16.msra.mxu0 0
  %324 = vmatpush.bf16.msra.mxu0 0
  %325 = vmatpush.bf16.msra.mxu0 0
  %326 = vmatpush.bf16.msra.mxu0 0
  %327 = vmatpush.bf16.msra.mxu0 0
  %328 = vmatpush.bf16.msra.mxu0 0
  %329 = vmatpush.bf16.msra.mxu0 %v314
  %330 = vmatmul.bf16.gmra.mxu0 %v312
  %v331 = vpop.f32.mrf.mxu0
  %v332 = vadd.f32 0.0, %v331
  %v333 = vpop.f32.mrf.mxu0
  %334 = vdwg.mxu0
  %335 = vmatpush.bf16.msra.mxu0 0
  %336 = vmatpush.bf16.msra.mxu0 0
  %337 = vmatpush.bf16.msra.mxu0 0
  %338 = vmatpush.bf16.msra.mxu0 0
  %339 = vmatpush.bf16.msra.mxu0 0
  %340 = vmatpush.bf16.msra.mxu0 0
  %341 = vmatpush.bf16.msra.mxu0 0
  %342 = vmatpush.bf16.msra.mxu0 %v316
  %343 = vmatmul.bf16.gmra.mxu0 %v312
  %v344 = vpop.f32.mrf.mxu0
  %v345 = vadd.f32 0.0, %v344
  %v346 = vpop.f32.mrf.mxu0
  %347 = vdwg.mxu0
  %348 = vmatpush.bf16.msra.mxu0 0
  %349 = vmatpush.bf16.msra.mxu0 0
  %350 = vmatpush.bf16.msra.mxu0 0
  %351 = vmatpush.bf16.msra.mxu0 0
  %352 = vmatpush.bf16.msra.mxu0 0
  %353 = vmatpush.bf16.msra.mxu0 0
  %354 = vmatpush.bf16.msra.mxu0 0
  %355 = vmatpush.bf16.msra.mxu0 %v318
  %356 = vmatmul.bf16.gmra.mxu0 %v312
  %v357 = vpop.f32.mrf.mxu0
  %v358 = vadd.f32 0.0, %v357
  %v359 = vpop.f32.mrf.mxu0
  %360 = vdwg.mxu0
  %361 = vmatpush.bf16.msra.mxu0 0
  %362 = vmatpush.bf16.msra.mxu0 0
  %363 = vmatpush.bf16.msra.mxu0 0
  %364 = vmatpush.bf16.msra.mxu0 0
  %365 = vmatpush.bf16.msra.mxu0 0
  %366 = vmatpush.bf16.msra.mxu0 0
  %367 = vmatpush.bf16.msra.mxu0 0
  %368 = vmatpush.bf16.msra.mxu0 %v320
  %369 = vmatmul.bf16.gmra.mxu0 %v312
  %v370 = vpop.f32.mrf.mxu0
  %v371 = vadd.f32 0.0, %v370
  %v372 = vpop.f32.mrf.mxu0
  %373 = vdwg.mxu0
  %v378 = vrot.slane %v345, 6
  %v379 = vrot.slane %v358, 4
  %v380 = vrot.slane %v371, 2
  %v381 = vsel %vm177, %v332, %v378
  %v382 = vsel %vm246, %v379, %v380
  %v383 = vsel %vm248, %v381, %v382
  %v384 = vsel %vm250, %v332, %v378
  %v385 = vsel %vm252, %v380, %v379
  %v386 = vsel %vm254, %v384, %v385
  %v387 = vrot.slane %v386, 2
  %v391 = vunpack.c.l.s4 1966171168
  %v392 = vunpack.c.0.s8 %v391
  %v393 = vperm.slane %v383, %v392
  %v395 = vunpack.c.l.s4 1966171168
  %v396 = vunpack.c.0.s8 %v395
  %v397 = vperm.slane %v387, %v396
  %398 = vrot.lane.b32.xlu0 %v299, 1
  %v399 = vpop.permute.xlu0 %398
  %400 = vrot.lane.b32.xlu0 %v302, 1
  %v401 = vpop.permute.xlu0 %400
  %v402 = vsel %vm272, 1.0, %v399
  %v403 = vsel %vm272, 1.0, %v401
  %v404 = vsub.f32 %v393, 1.0
  %v405 = vsub.f32 %v397, 1.0
  %v406 = vmul.f32 %v402, %v404
  %v407 = vmul.f32 %v403, %v405
  %v408 = vadd.f32 %v299, %v406
  %v409 = vadd.f32 %v302, %v407
  %410 = vmatpush.msra.mxu0 %v160
  %411 = vmatpush.msra.mxu0 %v159
  %412 = vmatpush.msra.mxu0 %v158
  %413 = vmatpush.msra.mxu0 %v157
  %414 = vmatpush.msra.mxu0 %v156
  %415 = vmatpush.msra.mxu0 %v155
  %416 = vmatpush.msra.mxu0 %v154
  %417 = vmatpush.msra.mxu0 %v153
  %418 = vmatpush.msra.mxu0 %v152
  %419 = vmatpush.msra.mxu0 %v151
  %420 = vmatpush.msra.mxu0 %v150
  %421 = vmatpush.msra.mxu0 %v149
  %422 = vmatpush.msra.mxu0 %v148
  %423 = vmatpush.msra.mxu0 %v147
  %424 = vmatpush.msra.mxu0 %v146
  %425 = vmatpush.msra.mxu0 %v145
  %426 = vmatmul.f32.gmra.mxu0 %v408
  %v427 = vpop.f32.mrf.mxu0
  %v428 = vadd.f32 1.0, %v427
  %429 = vmatmul.f32.gmra.mxu0 %v409
  %v430 = vpop.f32.mrf.mxu0
  %v431 = vadd.f32 1.0, %v430
  %432 = vdwg.mxu0
  %s433 = scalar_lea.vmem %s44, 4
  %v434 = vld [vmem:[%s433] sm:$0x3]
  %435 = vst [vmem:[#allocation1] ss:$4 sm:$0xff] %v144
  %v436 = vld.sshfl [vmem:[#allocation1] sm:$0xff pattern:$0x73625140]
  %v437 = vld.sshfl [vmem:[#allocation1 + $0x8] sm:$0xff pattern:$0x73625140]
  %v438 = vld.sshfl [vmem:[#allocation1 + $0x10] sm:$0xff pattern:$0x73625140]
  %v439 = vld.sshfl [vmem:[#allocation1 + $0x18] sm:$0xff pattern:$0x73625140]
  %v441 = vsel %vm173, %v434, 0
  %v443 = vsel %vm177, %v436, 0
  %v445 = vsel %vm177, %v437, 0
  %v447 = vsel %vm177, %v438, 0
  %v449 = vsel %vm177, %v439, 0
  %451 = vmatpush.bf16.msra.mxu0 0
  %452 = vmatpush.bf16.msra.mxu0 0
  %453 = vmatpush.bf16.msra.mxu0 0
  %454 = vmatpush.bf16.msra.mxu0 0
  %455 = vmatpush.bf16.msra.mxu0 0
  %456 = vmatpush.bf16.msra.mxu0 0
  %457 = vmatpush.bf16.msra.mxu0 0
  %458 = vmatpush.bf16.msra.mxu0 %v443
  %459 = vmatmul.bf16.gmra.mxu0 %v441
  %v460 = vpop.f32.mrf.mxu0
  %v461 = vadd.f32 0.0, %v460
  %v462 = vpop.f32.mrf.mxu0
  %463 = vdwg.mxu0
  %464 = vmatpush.bf16.msra.mxu0 0
  %465 = vmatpush.bf16.msra.mxu0 0
  %466 = vmatpush.bf16.msra.mxu0 0
  %467 = vmatpush.bf16.msra.mxu0 0
  %468 = vmatpush.bf16.msra.mxu0 0
  %469 = vmatpush.bf16.msra.mxu0 0
  %470 = vmatpush.bf16.msra.mxu0 0
  %471 = vmatpush.bf16.msra.mxu0 %v445
  %472 = vmatmul.bf16.gmra.mxu0 %v441
  %v473 = vpop.f32.mrf.mxu0
  %v474 = vadd.f32 0.0, %v473
  %v475 = vpop.f32.mrf.mxu0
  %476 = vdwg.mxu0
  %477 = vmatpush.bf16.msra.mxu0 0
  %478 = vmatpush.bf16.msra.mxu0 0
  %479 = vmatpush.bf16.msra.mxu0 0
  %480 = vmatpush.bf16.msra.mxu0 0
  %481 = vmatpush.bf16.msra.mxu0 0
  %482 = vmatpush.bf16.msra.mxu0 0
  %483 = vmatpush.bf16.msra.mxu0 0
  %484 = vmatpush.bf16.msra.mxu0 %v447
  %485 = vmatmul.bf16.gmra.mxu0 %v441
  %v486 = vpop.f32.mrf.mxu0
  %v487 = vadd.f32 0.0, %v486
  %v488 = vpop.f32.mrf.mxu0
  %489 = vdwg.mxu0
  %490 = vmatpush.bf16.msra.mxu0 0
  %491 = vmatpush.bf16.msra.mxu0 0
  %492 = vmatpush.bf16.msra.mxu0 0
  %493 = vmatpush.bf16.msra.mxu0 0
  %494 = vmatpush.bf16.msra.mxu0 0
  %495 = vmatpush.bf16.msra.mxu0 0
  %496 = vmatpush.bf16.msra.mxu0 0
  %497 = vmatpush.bf16.msra.mxu0 %v449
  %498 = vmatmul.bf16.gmra.mxu0 %v441
  %v499 = vpop.f32.mrf.mxu0
  %v500 = vadd.f32 0.0, %v499
  %v501 = vpop.f32.mrf.mxu0
  %502 = vdwg.mxu0
  %v507 = vrot.slane %v474, 6
  %v508 = vrot.slane %v487, 4
  %v509 = vrot.slane %v500, 2
  %v510 = vsel %vm177, %v461, %v507
  %v511 = vsel %vm246, %v508, %v509
  %v512 = vsel %vm248, %v510, %v511
  %v513 = vsel %vm250, %v461, %v507
  %v514 = vsel %vm252, %v509, %v508
  %v515 = vsel %vm254, %v513, %v514
  %v516 = vrot.slane %v515, 2
  %v520 = vunpack.c.l.s4 1966171168
  %v521 = vunpack.c.0.s8 %v520
  %v522 = vperm.slane %v512, %v521
  %v524 = vunpack.c.l.s4 1966171168
  %v525 = vunpack.c.0.s8 %v524
  %v526 = vperm.slane %v516, %v525
  %527 = vrot.lane.b32.xlu0 %v428, 1
  %v528 = vpop.permute.xlu0 %527
  %529 = vrot.lane.b32.xlu0 %v431, 1
  %v530 = vpop.permute.xlu0 %529
  %v531 = vsel %vm272, 1.0, %v528
  %v532 = vsel %vm272, 1.0, %v530
  %v533 = vsub.f32 %v522, 1.0
  %v534 = vsub.f32 %v526, 1.0
  %v535 = vmul.f32 %v531, %v533
  %v536 = vmul.f32 %v532, %v534
  %v537 = vadd.f32 %v428, %v535
  %v538 = vadd.f32 %v431, %v536
  %539 = vmatpush.msra.mxu0 %v160
  %540 = vmatpush.msra.mxu0 %v159
  %541 = vmatpush.msra.mxu0 %v158
  %542 = vmatpush.msra.mxu0 %v157
  %543 = vmatpush.msra.mxu0 %v156
  %544 = vmatpush.msra.mxu0 %v155
  %545 = vmatpush.msra.mxu0 %v154
  %546 = vmatpush.msra.mxu0 %v153
  %547 = vmatpush.msra.mxu0 %v152
  %548 = vmatpush.msra.mxu0 %v151
  %549 = vmatpush.msra.mxu0 %v150
  %550 = vmatpush.msra.mxu0 %v149
  %551 = vmatpush.msra.mxu0 %v148
  %552 = vmatpush.msra.mxu0 %v147
  %553 = vmatpush.msra.mxu0 %v146
  %554 = vmatpush.msra.mxu0 %v145
  %555 = vmatmul.f32.gmra.mxu0 %v537
  %v556 = vpop.f32.mrf.mxu0
  %v557 = vadd.f32 1.0, %v556
  %558 = vmatmul.f32.gmra.mxu0 %v538
  %v559 = vpop.f32.mrf.mxu0
  %v560 = vadd.f32 1.0, %v559
  %561 = vdwg.mxu0
  %s562 = scalar_lea.vmem %s44, 6
  %v563 = vld [vmem:[%s562] sm:$0x3]
  %564 = vst [vmem:[#allocation1] ss:$4 sm:$0xff] %v144
  %v565 = vld.sshfl [vmem:[#allocation1] sm:$0xff pattern:$0x73625140]
  %v566 = vld.sshfl [vmem:[#allocation1 + $0x8] sm:$0xff pattern:$0x73625140]
  %v567 = vld.sshfl [vmem:[#allocation1 + $0x10] sm:$0xff pattern:$0x73625140]
  %v568 = vld.sshfl [vmem:[#allocation1 + $0x18] sm:$0xff pattern:$0x73625140]
  %v570 = vsel %vm173, %v563, 0
  %v572 = vsel %vm177, %v565, 0
  %v574 = vsel %vm177, %v566, 0
  %v576 = vsel %vm177, %v567, 0
  %v578 = vsel %vm177, %v568, 0
  %580 = vmatpush.bf16.msra.mxu0 0
  %581 = vmatpush.bf16.msra.mxu0 0
  %582 = vmatpush.bf16.msra.mxu0 0
  %583 = vmatpush.bf16.msra.mxu0 0
  %584 = vmatpush.bf16.msra.mxu0 0
  %585 = vmatpush.bf16.msra.mxu0 0
  %586 = vmatpush.bf16.msra.mxu0 0
  %587 = vmatpush.bf16.msra.mxu0 %v572
  %588 = vmatmul.bf16.gmra.mxu0 %v570
  %v589 = vpop.f32.mrf.mxu0
  %v590 = vadd.f32 0.0, %v589
  %v591 = vpop.f32.mrf.mxu0
  %592 = vdwg.mxu0
  %593 = vmatpush.bf16.msra.mxu0 0
  %594 = vmatpush.bf16.msra.mxu0 0
  %595 = vmatpush.bf16.msra.mxu0 0
  %596 = vmatpush.bf16.msra.mxu0 0
  %597 = vmatpush.bf16.msra.mxu0 0
  %598 = vmatpush.bf16.msra.mxu0 0
  %599 = vmatpush.bf16.msra.mxu0 0
  %600 = vmatpush.bf16.msra.mxu0 %v574
  %601 = vmatmul.bf16.gmra.mxu0 %v570
  %v602 = vpop.f32.mrf.mxu0
  %v603 = vadd.f32 0.0, %v602
  %v604 = vpop.f32.mrf.mxu0
  %605 = vdwg.mxu0
  %606 = vmatpush.bf16.msra.mxu0 0
  %607 = vmatpush.bf16.msra.mxu0 0
  %608 = vmatpush.bf16.msra.mxu0 0
  %609 = vmatpush.bf16.msra.mxu0 0
  %610 = vmatpush.bf16.msra.mxu0 0
  %611 = vmatpush.bf16.msra.mxu0 0
  %612 = vmatpush.bf16.msra.mxu0 0
  %613 = vmatpush.bf16.msra.mxu0 %v576
  %614 = vmatmul.bf16.gmra.mxu0 %v570
  %v615 = vpop.f32.mrf.mxu0
  %v616 = vadd.f32 0.0, %v615
  %v617 = vpop.f32.mrf.mxu0
  %618 = vdwg.mxu0
  %619 = vmatpush.bf16.msra.mxu0 0
  %620 = vmatpush.bf16.msra.mxu0 0
  %621 = vmatpush.bf16.msra.mxu0 0
  %622 = vmatpush.bf16.msra.mxu0 0
  %623 = vmatpush.bf16.msra.mxu0 0
  %624 = vmatpush.bf16.msra.mxu0 0
  %625 = vmatpush.bf16.msra.mxu0 0
  %626 = vmatpush.bf16.msra.mxu0 %v578
  %627 = vmatmul.bf16.gmra.mxu0 %v570
  %v628 = vpop.f32.mrf.mxu0
  %v629 = vadd.f32 0.0, %v628
  %v630 = vpop.f32.mrf.mxu0
  %631 = vdwg.mxu0
  %v636 = vrot.slane %v603, 6
  %v637 = vrot.slane %v616, 4
  %v638 = vrot.slane %v629, 2
  %v639 = vsel %vm177, %v590, %v636
  %v640 = vsel %vm246, %v637, %v638
  %v641 = vsel %vm248, %v639, %v640
  %v642 = vsel %vm250, %v590, %v636
  %v643 = vsel %vm252, %v638, %v637
  %v644 = vsel %vm254, %v642, %v643
  %v645 = vrot.slane %v644, 2
  %v649 = vunpack.c.l.s4 1966171168
  %v650 = vunpack.c.0.s8 %v649
  %v651 = vperm.slane %v641, %v650
  %v653 = vunpack.c.l.s4 1966171168
  %v654 = vunpack.c.0.s8 %v653
  %v655 = vperm.slane %v645, %v654
  %656 = vrot.lane.b32.xlu0 %v557, 1
  %v657 = vpop.permute.xlu0 %656
  %658 = vrot.lane.b32.xlu0 %v560, 1
  %v659 = vpop.permute.xlu0 %658
  %v660 = vsel %vm272, 1.0, %v657
  %v661 = vsel %vm272, 1.0, %v659
  %v662 = vsub.f32 %v651, 1.0
  %v663 = vsub.f32 %v655, 1.0
  %v664 = vmul.f32 %v660, %v662
  %v665 = vmul.f32 %v661, %v663
  %v666 = vadd.f32 %v557, %v664
  %v667 = vadd.f32 %v560, %v665
  %668 = vmatpush.msra.mxu0 %v160
  %669 = vmatpush.msra.mxu0 %v159
  %670 = vmatpush.msra.mxu0 %v158
  %671 = vmatpush.msra.mxu0 %v157
  %672 = vmatpush.msra.mxu0 %v156
  %673 = vmatpush.msra.mxu0 %v155
  %674 = vmatpush.msra.mxu0 %v154
  %675 = vmatpush.msra.mxu0 %v153
  %676 = vmatpush.msra.mxu0 %v152
  %677 = vmatpush.msra.mxu0 %v151
  %678 = vmatpush.msra.mxu0 %v150
  %679 = vmatpush.msra.mxu0 %v149
  %680 = vmatpush.msra.mxu0 %v148
  %681 = vmatpush.msra.mxu0 %v147
  %682 = vmatpush.msra.mxu0 %v146
  %683 = vmatpush.msra.mxu0 %v145
  %684 = vmatmul.f32.gmra.mxu0 %v666
  %v685 = vpop.f32.mrf.mxu0
  %v686 = vadd.f32 1.0, %v685
  %687 = vmatmul.f32.gmra.mxu0 %v667
  %v688 = vpop.f32.mrf.mxu0
  %v689 = vadd.f32 1.0, %v688
  %690 = vdwg.mxu0
  %s691 = scalar_lea.vmem %s44, 8
  %v692 = vld [vmem:[%s691] sm:$0x3]
  %693 = vst [vmem:[#allocation1] ss:$4 sm:$0xff] %v144
  %v694 = vld.sshfl [vmem:[#allocation1] sm:$0xff pattern:$0x73625140]
  %v695 = vld.sshfl [vmem:[#allocation1 + $0x8] sm:$0xff pattern:$0x73625140]
  %v696 = vld.sshfl [vmem:[#allocation1 + $0x10] sm:$0xff pattern:$0x73625140]
  %v697 = vld.sshfl [vmem:[#allocation1 + $0x18] sm:$0xff pattern:$0x73625140]
  %v699 = vsel %vm173, %v692, 0
  %v701 = vsel %vm177, %v694, 0
  %v703 = vsel %vm177, %v695, 0
  %v705 = vsel %vm177, %v696, 0
  %v707 = vsel %vm177, %v697, 0
  %709 = vmatpush.bf16.msra.mxu0 0
  %710 = vmatpush.bf16.msra.mxu0 0
  %711 = vmatpush.bf16.msra.mxu0 0
  %712 = vmatpush.bf16.msra.mxu0 0
  %713 = vmatpush.bf16.msra.mxu0 0
  %714 = vmatpush.bf16.msra.mxu0 0
  %715 = vmatpush.bf16.msra.mxu0 0
  %716 = vmatpush.bf16.msra.mxu0 %v701
  %717 = vmatmul.bf16.gmra.mxu0 %v699
  %v718 = vpop.f32.mrf.mxu0
  %v719 = vadd.f32 0.0, %v718
  %v720 = vpop.f32.mrf.mxu0
  %721 = vdwg.mxu0
  %722 = vmatpush.bf16.msra.mxu0 0
  %723 = vmatpush.bf16.msra.mxu0 0
  %724 = vmatpush.bf16.msra.mxu0 0
  %725 = vmatpush.bf16.msra.mxu0 0
  %726 = vmatpush.bf16.msra.mxu0 0
  %727 = vmatpush.bf16.msra.mxu0 0
  %728 = vmatpush.bf16.msra.mxu0 0
  %729 = vmatpush.bf16.msra.mxu0 %v703
  %730 = vmatmul.bf16.gmra.mxu0 %v699
  %v731 = vpop.f32.mrf.mxu0
  %v732 = vadd.f32 0.0, %v731
  %v733 = vpop.f32.mrf.mxu0
  %734 = vdwg.mxu0
  %735 = vmatpush.bf16.msra.mxu0 0
  %736 = vmatpush.bf16.msra.mxu0 0
  %737 = vmatpush.bf16.msra.mxu0 0
  %738 = vmatpush.bf16.msra.mxu0 0
  %739 = vmatpush.bf16.msra.mxu0 0
  %740 = vmatpush.bf16.msra.mxu0 0
  %741 = vmatpush.bf16.msra.mxu0 0
  %742 = vmatpush.bf16.msra.mxu0 %v705
  %743 = vmatmul.bf16.gmra.mxu0 %v699
  %v744 = vpop.f32.mrf.mxu0
  %v745 = vadd.f32 0.0, %v744
  %v746 = vpop.f32.mrf.mxu0
  %747 = vdwg.mxu0
  %748 = vmatpush.bf16.msra.mxu0 0
  %749 = vmatpush.bf16.msra.mxu0 0
  %750 = vmatpush.bf16.msra.mxu0 0
  %751 = vmatpush.bf16.msra.mxu0 0
  %752 = vmatpush.bf16.msra.mxu0 0
  %753 = vmatpush.bf16.msra.mxu0 0
  %754 = vmatpush.bf16.msra.mxu0 0
  %755 = vmatpush.bf16.msra.mxu0 %v707
  %756 = vmatmul.bf16.gmra.mxu0 %v699
  %v757 = vpop.f32.mrf.mxu0
  %v758 = vadd.f32 0.0, %v757
  %v759 = vpop.f32.mrf.mxu0
  %760 = vdwg.mxu0
  %v765 = vrot.slane %v732, 6
  %v766 = vrot.slane %v745, 4
  %v767 = vrot.slane %v758, 2
  %v768 = vsel %vm177, %v719, %v765
  %v769 = vsel %vm246, %v766, %v767
  %v770 = vsel %vm248, %v768, %v769
  %v771 = vsel %vm250, %v719, %v765
  %v772 = vsel %vm252, %v767, %v766
  %v773 = vsel %vm254, %v771, %v772
  %v774 = vrot.slane %v773, 2
  %v778 = vunpack.c.l.s4 1966171168
  %v779 = vunpack.c.0.s8 %v778
  %v780 = vperm.slane %v770, %v779
  %v782 = vunpack.c.l.s4 1966171168
  %v783 = vunpack.c.0.s8 %v782
  %v784 = vperm.slane %v774, %v783
  %785 = vrot.lane.b32.xlu0 %v686, 1
  %v786 = vpop.permute.xlu0 %785
  %787 = vrot.lane.b32.xlu0 %v689, 1
  %v788 = vpop.permute.xlu0 %787
  %v789 = vsel %vm272, 1.0, %v786
  %v790 = vsel %vm272, 1.0, %v788
  %v791 = vsub.f32 %v780, 1.0
  %v792 = vsub.f32 %v784, 1.0
  %v793 = vmul.f32 %v789, %v791
  %v794 = vmul.f32 %v790, %v792
  %v795 = vadd.f32 %v686, %v793
  %v796 = vadd.f32 %v689, %v794
  %797 = vmatpush.msra.mxu0 %v160
  %798 = vmatpush.msra.mxu0 %v159
  %799 = vmatpush.msra.mxu0 %v158
  %800 = vmatpush.msra.mxu0 %v157
  %801 = vmatpush.msra.mxu0 %v156
  %802 = vmatpush.msra.mxu0 %v155
  %803 = vmatpush.msra.mxu0 %v154
  %804 = vmatpush.msra.mxu0 %v153
  %805 = vmatpush.msra.mxu0 %v152
  %806 = vmatpush.msra.mxu0 %v151
  %807 = vmatpush.msra.mxu0 %v150
  %808 = vmatpush.msra.mxu0 %v149
  %809 = vmatpush.msra.mxu0 %v148
  %810 = vmatpush.msra.mxu0 %v147
  %811 = vmatpush.msra.mxu0 %v146
  %812 = vmatpush.msra.mxu0 %v145
  %813 = vmatmul.f32.gmra.mxu0 %v795
  %v814 = vpop.f32.mrf.mxu0
  %v815 = vadd.f32 1.0, %v814
  %816 = vmatmul.f32.gmra.mxu0 %v796
  %v817 = vpop.f32.mrf.mxu0
  %v818 = vadd.f32 1.0, %v817
  %819 = vdwg.mxu0
  %s820 = scalar_lea.vmem %s44, 10
  %v821 = vld [vmem:[%s820] sm:$0x3]
  %822 = vst [vmem:[#allocation1] ss:$4 sm:$0xff] %v144
  %v823 = vld.sshfl [vmem:[#allocation1] sm:$0xff pattern:$0x73625140]
  %v824 = vld.sshfl [vmem:[#allocation1 + $0x8] sm:$0xff pattern:$0x73625140]
  %v825 = vld.sshfl [vmem:[#allocation1 + $0x10] sm:$0xff pattern:$0x73625140]
  %v826 = vld.sshfl [vmem:[#allocation1 + $0x18] sm:$0xff pattern:$0x73625140]
  %v828 = vsel %vm173, %v821, 0
  %v830 = vsel %vm177, %v823, 0
  %v832 = vsel %vm177, %v824, 0
  %v834 = vsel %vm177, %v825, 0
  %v836 = vsel %vm177, %v826, 0
  %838 = vmatpush.bf16.msra.mxu0 0
  %839 = vmatpush.bf16.msra.mxu0 0
  %840 = vmatpush.bf16.msra.mxu0 0
  %841 = vmatpush.bf16.msra.mxu0 0
  %842 = vmatpush.bf16.msra.mxu0 0
  %843 = vmatpush.bf16.msra.mxu0 0
  %844 = vmatpush.bf16.msra.mxu0 0
  %845 = vmatpush.bf16.msra.mxu0 %v830
  %846 = vmatmul.bf16.gmra.mxu0 %v828
  %v847 = vpop.f32.mrf.mxu0
  %v848 = vadd.f32 0.0, %v847
  %v849 = vpop.f32.mrf.mxu0
  %850 = vdwg.mxu0
  %851 = vmatpush.bf16.msra.mxu0 0
  %852 = vmatpush.bf16.msra.mxu0 0
  %853 = vmatpush.bf16.msra.mxu0 0
  %854 = vmatpush.bf16.msra.mxu0 0
  %855 = vmatpush.bf16.msra.mxu0 0
  %856 = vmatpush.bf16.msra.mxu0 0
  %857 = vmatpush.bf16.msra.mxu0 0
  %858 = vmatpush.bf16.msra.mxu0 %v832
  %859 = vmatmul.bf16.gmra.mxu0 %v828
  %v860 = vpop.f32.mrf.mxu0
  %v861 = vadd.f32 0.0, %v860
  %v862 = vpop.f32.mrf.mxu0
  %863 = vdwg.mxu0
  %864 = vmatpush.bf16.msra.mxu0 0
  %865 = vmatpush.bf16.msra.mxu0 0
  %866 = vmatpush.bf16.msra.mxu0 0
  %867 = vmatpush.bf16.msra.mxu0 0
  %868 = vmatpush.bf16.msra.mxu0 0
  %869 = vmatpush.bf16.msra.mxu0 0
  %870 = vmatpush.bf16.msra.mxu0 0
  %871 = vmatpush.bf16.msra.mxu0 %v834
  %872 = vmatmul.bf16.gmra.mxu0 %v828
  %v873 = vpop.f32.mrf.mxu0
  %v874 = vadd.f32 0.0, %v873
  %v875 = vpop.f32.mrf.mxu0
  %876 = vdwg.mxu0
  %877 = vmatpush.bf16.msra.mxu0 0
  %878 = vmatpush.bf16.msra.mxu0 0
  %879 = vmatpush.bf16.msra.mxu0 0
  %880 = vmatpush.bf16.msra.mxu0 0
  %881 = vmatpush.bf16.msra.mxu0 0
  %882 = vmatpush.bf16.msra.mxu0 0
  %883 = vmatpush.bf16.msra.mxu0 0
  %884 = vmatpush.bf16.msra.mxu0 %v836
  %885 = vmatmul.bf16.gmra.mxu0 %v828
  %v886 = vpop.f32.mrf.mxu0
  %v887 = vadd.f32 0.0, %v886
  %v888 = vpop.f32.mrf.mxu0
  %889 = vdwg.mxu0
  %v894 = vrot.slane %v861, 6
  %v895 = vrot.slane %v874, 4
  %v896 = vrot.slane %v887, 2
  %v897 = vsel %vm177, %v848, %v894
  %v898 = vsel %vm246, %v895, %v896
  %v899 = vsel %vm248, %v897, %v898
  %v900 = vsel %vm250, %v848, %v894
  %v901 = vsel %vm252, %v896, %v895
  %v902 = vsel %vm254, %v900, %v901
  %v903 = vrot.slane %v902, 2
  %v907 = vunpack.c.l.s4 1966171168
  %v908 = vunpack.c.0.s8 %v907
  %v909 = vperm.slane %v899, %v908
  %v911 = vunpack.c.l.s4 1966171168
  %v912 = vunpack.c.0.s8 %v911
  %v913 = vperm.slane %v903, %v912
  %914 = vrot.lane.b32.xlu0 %v815, 1
  %v915 = vpop.permute.xlu0 %914
  %916 = vrot.lane.b32.xlu0 %v818, 1
  %v917 = vpop.permute.xlu0 %916
  %v918 = vsel %vm272, 1.0, %v915
  %v919 = vsel %vm272, 1.0, %v917
  %v920 = vsub.f32 %v909, 1.0
  %v921 = vsub.f32 %v913, 1.0
  %v922 = vmul.f32 %v918, %v920
  %v923 = vmul.f32 %v919, %v921
  %v924 = vadd.f32 %v815, %v922
  %v925 = vadd.f32 %v818, %v923
  %926 = vmatpush.msra.mxu0 %v160
  %927 = vmatpush.msra.mxu0 %v159
  %928 = vmatpush.msra.mxu0 %v158
  %929 = vmatpush.msra.mxu0 %v157
  %930 = vmatpush.msra.mxu0 %v156
  %931 = vmatpush.msra.mxu0 %v155
  %932 = vmatpush.msra.mxu0 %v154
  %933 = vmatpush.msra.mxu0 %v153
  %934 = vmatpush.msra.mxu0 %v152
  %935 = vmatpush.msra.mxu0 %v151
  %936 = vmatpush.msra.mxu0 %v150
  %937 = vmatpush.msra.mxu0 %v149
  %938 = vmatpush.msra.mxu0 %v148
  %939 = vmatpush.msra.mxu0 %v147
  %940 = vmatpush.msra.mxu0 %v146
  %941 = vmatpush.msra.mxu0 %v145
  %942 = vmatmul.f32.gmra.mxu0 %v924
  %v943 = vpop.f32.mrf.mxu0
  %v944 = vadd.f32 1.0, %v943
  %945 = vmatmul.f32.gmra.mxu0 %v925
  %v946 = vpop.f32.mrf.mxu0
  %v947 = vadd.f32 1.0, %v946
  %948 = vdwg.mxu0
  %s949 = scalar_lea.vmem %s44, 12
  %v950 = vld [vmem:[%s949] sm:$0x3]
  %951 = vst [vmem:[#allocation1] ss:$4 sm:$0xff] %v144
  %v952 = vld.sshfl [vmem:[#allocation1] sm:$0xff pattern:$0x73625140]
  %v953 = vld.sshfl [vmem:[#allocation1 + $0x8] sm:$0xff pattern:$0x73625140]
  %v954 = vld.sshfl [vmem:[#allocation1 + $0x10] sm:$0xff pattern:$0x73625140]
  %v955 = vld.sshfl [vmem:[#allocation1 + $0x18] sm:$0xff pattern:$0x73625140]
  %v957 = vsel %vm173, %v950, 0
  %v959 = vsel %vm177, %v952, 0
  %v961 = vsel %vm177, %v953, 0
  %v963 = vsel %vm177, %v954, 0
  %v965 = vsel %vm177, %v955, 0
  %967 = vmatpush.bf16.msra.mxu0 0
  %968 = vmatpush.bf16.msra.mxu0 0
  %969 = vmatpush.bf16.msra.mxu0 0
  %970 = vmatpush.bf16.msra.mxu0 0
  %971 = vmatpush.bf16.msra.mxu0 0
  %972 = vmatpush.bf16.msra.mxu0 0
  %973 = vmatpush.bf16.msra.mxu0 0
  %974 = vmatpush.bf16.msra.mxu0 %v959
  %975 = vmatmul.bf16.gmra.mxu0 %v957
  %v976 = vpop.f32.mrf.mxu0
  %v977 = vadd.f32 0.0, %v976
  %v978 = vpop.f32.mrf.mxu0
  %979 = vdwg.mxu0
  %980 = vmatpush.bf16.msra.mxu0 0
  %981 = vmatpush.bf16.msra.mxu0 0
  %982 = vmatpush.bf16.msra.mxu0 0
  %983 = vmatpush.bf16.msra.mxu0 0
  %984 = vmatpush.bf16.msra.mxu0 0
  %985 = vmatpush.bf16.msra.mxu0 0
  %986 = vmatpush.bf16.msra.mxu0 0
  %987 = vmatpush.bf16.msra.mxu0 %v961
  %988 = vmatmul.bf16.gmra.mxu0 %v957
  %v989 = vpop.f32.mrf.mxu0
  %v990 = vadd.f32 0.0, %v989
  %v991 = vpop.f32.mrf.mxu0
  %992 = vdwg.mxu0
  %993 = vmatpush.bf16.msra.mxu0 0
  %994 = vmatpush.bf16.msra.mxu0 0
  %995 = vmatpush.bf16.msra.mxu0 0
  %996 = vmatpush.bf16.msra.mxu0 0
  %997 = vmatpush.bf16.msra.mxu0 0
  %998 = vmatpush.bf16.msra.mxu0 0
  %999 = vmatpush.bf16.msra.mxu0 0
  %1000 = vmatpush.bf16.msra.mxu0 %v963
  %1001 = vmatmul.bf16.gmra.mxu0 %v957
  %v1002 = vpop.f32.mrf.mxu0
  %v1003 = vadd.f32 0.0, %v1002
  %v1004 = vpop.f32.mrf.mxu0
  %1005 = vdwg.mxu0
  %1006 = vmatpush.bf16.msra.mxu0 0
  %1007 = vmatpush.bf16.msra.mxu0 0
  %1008 = vmatpush.bf16.msra.mxu0 0
  %1009 = vmatpush.bf16.msra.mxu0 0
  %1010 = vmatpush.bf16.msra.mxu0 0
  %1011 = vmatpush.bf16.msra.mxu0 0
  %1012 = vmatpush.bf16.msra.mxu0 0
  %1013 = vmatpush.bf16.msra.mxu0 %v965
  %1014 = vmatmul.bf16.gmra.mxu0 %v957
  %v1015 = vpop.f32.mrf.mxu0
  %v1016 = vadd.f32 0.0, %v1015
  %v1017 = vpop.f32.mrf.mxu0
  %1018 = vdwg.mxu0
  %v1023 = vrot.slane %v990, 6
  %v1024 = vrot.slane %v1003, 4
  %v1025 = vrot.slane %v1016, 2
  %v1026 = vsel %vm177, %v977, %v1023
  %v1027 = vsel %vm246, %v1024, %v1025
  %v1028 = vsel %vm248, %v1026, %v1027
  %v1029 = vsel %vm250, %v977, %v1023
  %v1030 = vsel %vm252, %v1025, %v1024
  %v1031 = vsel %vm254, %v1029, %v1030
  %v1032 = vrot.slane %v1031, 2
  %v1036 = vunpack.c.l.s4 1966171168
  %v1037 = vunpack.c.0.s8 %v1036
  %v1038 = vperm.slane %v1028, %v1037
  %v1040 = vunpack.c.l.s4 1966171168
  %v1041 = vunpack.c.0.s8 %v1040
  %v1042 = vperm.slane %v1032, %v1041
  %1043 = vrot.lane.b32.xlu0 %v944, 1
  %v1044 = vpop.permute.xlu0 %1043
  %1045 = vrot.lane.b32.xlu0 %v947, 1
  %v1046 = vpop.permute.xlu0 %1045
  %v1047 = vsel %vm272, 1.0, %v1044
  %v1048 = vsel %vm272, 1.0, %v1046
  %v1049 = vsub.f32 %v1038, 1.0
  %v1050 = vsub.f32 %v1042, 1.0
  %v1051 = vmul.f32 %v1047, %v1049
  %v1052 = vmul.f32 %v1048, %v1050
  %v1053 = vadd.f32 %v944, %v1051
  %v1054 = vadd.f32 %v947, %v1052
  %1055 = vmatpush.msra.mxu0 %v160
  %1056 = vmatpush.msra.mxu0 %v159
  %1057 = vmatpush.msra.mxu0 %v158
  %1058 = vmatpush.msra.mxu0 %v157
  %1059 = vmatpush.msra.mxu0 %v156
  %1060 = vmatpush.msra.mxu0 %v155
  %1061 = vmatpush.msra.mxu0 %v154
  %1062 = vmatpush.msra.mxu0 %v153
  %1063 = vmatpush.msra.mxu0 %v152
  %1064 = vmatpush.msra.mxu0 %v151
  %1065 = vmatpush.msra.mxu0 %v150
  %1066 = vmatpush.msra.mxu0 %v149
  %1067 = vmatpush.msra.mxu0 %v148
  %1068 = vmatpush.msra.mxu0 %v147
  %1069 = vmatpush.msra.mxu0 %v146
  %1070 = vmatpush.msra.mxu0 %v145
  %1071 = vmatmul.f32.gmra.mxu0 %v1053
  %v1072 = vpop.f32.mrf.mxu0
  %v1073 = vadd.f32 1.0, %v1072
  %1074 = vmatmul.f32.gmra.mxu0 %v1054
  %v1075 = vpop.f32.mrf.mxu0
  %v1076 = vadd.f32 1.0, %v1075
  %1077 = vdwg.mxu0
  %1078 = vst [vmem:[#allocation2] sm:$0xff] %v1073
  %1079 = vst [vmem:[#allocation2 + $0x8] sm:$0xff] %v1076
  // Predicated region
  $region14: #{sig_mmd.1} parent=0 // pred_check
    %p1080 = pneg %p55
  $region15: #{sig_mmd.1} parent=0 // pred_check_branch
    %1082 = sbr.rel (%p1080) target = $region17
  $region16: #{sig_mmd.1} parent=0 // pred_region
    %1085 = vrot.lane.b32.xlu0 %v1073, 122
    %v1086 = vpop.permute.xlu0 %1085
    %1087 = vrot.lane.b32.xlu0 %v1076, 122
    %v1088 = vpop.permute.xlu0 %1087
    %vm1091 = vcmask 7168
    %1092 = vst.msk [vmem:[%s4] sm:$0xff] %vm1091, %v1086
    %1093 = vst.msk [vmem:[%s4 + $0x8] sm:$0xff] %vm1091, %v1088
  $region17: #{sig_mmd.1} parent=0 // pred_fallthru
    _
  // Predicated region
  $region18: #{sig_mmd.1} parent=0 // pred_check
    _
  $region19: #{sig_mmd.1} parent=0 // pred_check_branch
    %1095 = sbr.rel (0) target = $region21
  $region20: #{sig_mmd.1} parent=0 // pred_region
    _
  $region21: #{sig_mmd.1} parent=0 // pred_fallthru
    _
  // Predicated region
  $region22: #{sig_mmd.1} parent=0 // pred_check
    _
  $region23: #{sig_mmd.1} parent=0 // pred_check_branch
    %1097 = sbr.rel (0) target = $region25
  $region24: #{sig_mmd.1} parent=0 // pred_region
    _
  $region25: #{sig_mmd.1} parent=0 // pred_fallthru
    _

</llo_original>
